<compile_context>
chip_gen: v7x
topology: tpu7x:2x2x1
jax: 0.10.0
libtpu: 0.0.40
codegen_flags: <defaults>
</compile_context>

<pallas_src>
import jax
import jax.numpy as jnp
from jax.experimental import pallas as pl
from jax.experimental.pallas import tpu as pltpu

BN_EPS = 1e-5
DEFAULT_BATCH_TILE = 256  # multiple of 8; sized so 2x(x tile + out tile) + ~13KB
                          # of weights fits comfortably in v7x's smaller VMEM.


def dynamic_dnn_kernel(x_ref, w1_ref, b1_ref, w2_ref, b2_ref, w3_ref, b3_ref,
                       o_ref):
    # x tile: (TB, in) bf16. Weights bf16, biases f32. All dots accumulate f32.
    x = x_ref[...]

    # ---- Linear(in, 64) + ReLU -------------------------------------------
    h = jnp.dot(x, w1_ref[...], preferred_element_type=jnp.float32)
    h = jnp.maximum(h + b1_ref[...], 0.0)

    # ---- BatchNorm1d(64) folded into W2'/b2' on the host -------------------
    # ---- Dropout(0.3): identity in eval mode -------------------------------

    # ---- Linear(64, 32) + ReLU (BN-folded weights) --------------------------
    h = jnp.dot(h.astype(jnp.bfloat16), w2_ref[...],
                preferred_element_type=jnp.float32)
    h = jnp.maximum(h + b2_ref[...], 0.0)

    # ---- Linear(32, out) ----------------------------------------------------
    out = jnp.dot(h.astype(jnp.bfloat16), w3_ref[...],
                  preferred_element_type=jnp.float32)
    o_ref[...] = (out + b3_ref[...]).astype(o_ref.dtype)


def fold_batchnorm(params):
    """Fold eval-mode BN (running stats) into the second Linear."""
    (w1, b1, gamma, beta, rmean, rvar, w2, b2, w3, b3) = params
    s = gamma * jax.lax.rsqrt(rvar + BN_EPS)          # (1, 64)
    t = beta - rmean * s                              # (1, 64)
    w2f = w2 * s.reshape(-1, 1)                       # (64, 32)
    b2f = t @ w2 + b2                                 # (1, 32)
    return w1, b1, w2f, b2f, w3, b3


def dynamic_dnn_forward(x, params, *, block_b=DEFAULT_BATCH_TILE):
    """Fused MLP forward. x: (B, input_size) float32."""
    w1, b1, w2f, b2f, w3, b3 = fold_batchnorm(params)
    B, in_size = x.shape
    out_size = w3.shape[1]

    # bf16 operands for the MXU path; biases stay f32.
    x_bf = x.astype(jnp.bfloat16)
    w1_bf = w1.astype(jnp.bfloat16)
    w2_bf = w2f.astype(jnp.bfloat16)
    w3_bf = w3.astype(jnp.bfloat16)

    # Batch tiling: small B -> one whole-batch tile; large B -> pad to tile.
    tb = B if B <= block_b else block_b
    n_tiles = pl.cdiv(B, tb)
    b_padded = n_tiles * tb
    if b_padded != B:
        x_bf = jnp.pad(x_bf, ((0, b_padded - B), (0, 0)))

    # x / out are tiled over batch; weights & biases stay resident.
    def x_map(i):
        return (i, 0)

    def const_map(i):
        return (0, 0)

    in_specs = [
        pl.BlockSpec((tb, in_size), x_map),
        pl.BlockSpec(w1_bf.shape, const_map),
        pl.BlockSpec(b1.shape, const_map),
        pl.BlockSpec(w2_bf.shape, const_map),
        pl.BlockSpec(b2f.shape, const_map),
        pl.BlockSpec(w3_bf.shape, const_map),
        pl.BlockSpec(b3.shape, const_map),
    ]
    out_spec = pl.BlockSpec((tb, out_size), x_map)

    out = pl.pallas_call(
        dynamic_dnn_kernel,
        out_shape=jax.ShapeDtypeStruct((b_padded, out_size), jnp.float32),
        grid=(n_tiles,),
        in_specs=in_specs,
        out_specs=out_spec,
        compiler_params=pltpu.CompilerParams(
            dimension_semantics=("parallel",),   # shard batch tiles across TCs (v7x)
            vmem_limit_bytes=64 * 1024 * 1024,
        ),
    )(x_bf, w1_bf, b1, w2_bf, b2f, w3_bf, b3)

    return out[:B] if b_padded != B else out


def init_params(key, input_size, output_size):
    """Deterministic parameter init matching DynamicDNN shapes."""
    ks = jax.random.split(key, 8)
    # Linear weights stored as (in_features, out_features) = W.T
    w1 = jax.random.normal(ks[0], (input_size, 64), jnp.float32) * 0.1
    b1 = jax.random.normal(ks[1], (1, 64), jnp.float32) * 0.01
    # BatchNorm1d(64) affine params / running stats (nontrivial values)
    gamma = jnp.ones((1, 64), jnp.float32)
    beta = jnp.zeros((1, 64), jnp.float32)
    rmean = jax.random.normal(ks[2], (1, 64), jnp.float32) * 0.05
    rvar = jnp.abs(jax.random.normal(ks[3], (1, 64), jnp.float32)) * 0.1 + 1.0
    w2 = jax.random.normal(ks[4], (64, 32), jnp.float32) * 0.1
    b2 = jax.random.normal(ks[5], (1, 32), jnp.float32) * 0.01
    w3 = jax.random.normal(ks[6], (32, output_size), jnp.float32) * 0.1
    b3 = jax.random.normal(ks[7], (1, output_size), jnp.float32) * 0.01
    return (w1, b1, gamma, beta, rmean, rvar, w2, b2, w3, b3)


def reference_forward_f32(x, params):
    """Pure-JAX f32 reference of the original (un-folded, full-precision) math."""
    (w1, b1, gamma, beta, rmean, rvar, w2, b2, w3, b3) = params
    h = jnp.maximum(x @ w1 + b1, 0.0)
    h = (h - rmean) / jnp.sqrt(rvar + BN_EPS) * gamma + beta
    h = jnp.maximum(h @ w2 + b2, 0.0)
    return h @ w3 + b3


def reference_forward_kernel_path(x, params):
    """Pure-JAX reference following the exact kernel arithmetic (folded BN + bf16)."""
    w1, b1, w2f, b2f, w3, b3 = fold_batchnorm(params)
    xb = x.astype(jnp.bfloat16)
    w1b, w2b, w3b = (w1.astype(jnp.bfloat16), w2f.astype(jnp.bfloat16),
                     w3.astype(jnp.bfloat16))
    h = jnp.maximum(
        jnp.dot(xb, w1b, preferred_element_type=jnp.float32) + b1, 0.0)
    h = jnp.maximum(
        jnp.dot(h.astype(jnp.bfloat16), w2b,
                preferred_element_type=jnp.float32) + b2f, 0.0)
    return jnp.dot(h.astype(jnp.bfloat16), w3b,
                   preferred_element_type=jnp.float32) + b3


if __name__ == "__main__":
    key = jax.random.PRNGKey(0)
    k_x, k_p = jax.random.split(key)

    batch, input_size, output_size = 8, 16, 8
    x = jax.random.normal(k_x, (batch, input_size), jnp.float32)
    params = init_params(k_p, input_size, output_size)

    out = dynamic_dnn_forward(x, params)
    out = jax.block_until_ready(out)
    assert out.shape == (batch, output_size)

    # Kernel-path check (same folding + bf16 arithmetic) — tight tolerance.
    ref_exact = reference_forward_kernel_path(x, params)
    assert jnp.allclose(out, ref_exact, atol=1e-3, rtol=1e-3)

    # Semantic check against the full-precision f32 module math — bf16-loose tolerance.
    ref_f32 = reference_forward_f32(x, params)
    assert jnp.allclose(out, ref_f32, atol=3e-2, rtol=3e-2)

    print("KERNEL_OK")
</pallas_src>

<mosaic_0001>
module attributes {stable_mosaic.version = 11 : i64} {
  func.func @dynamic_dnn_kernel(%arg0: i32, %arg1: memref<8x16xbf16, #tpu.memory_space<vmem>>, %arg2: memref<16x64xbf16, #tpu.memory_space<vmem>>, %arg3: memref<1x64xf32, #tpu.memory_space<vmem>>, %arg4: memref<64x32xbf16, #tpu.memory_space<vmem>>, %arg5: memref<1x32xf32, #tpu.memory_space<vmem>>, %arg6: memref<32x8xbf16, #tpu.memory_space<vmem>>, %arg7: memref<1x8xf32, #tpu.memory_space<vmem>>, %arg8: memref<8x8xf32, #tpu.memory_space<vmem>>) attributes {dimension_semantics = [#tpu.dimension_semantics<parallel>], iteration_bounds = array<i64: 1>, scalar_prefetch = 0 : i64, scratch_operands = 0 : i64, tpu.core_type = #tpu.core_type<tc>, window_params = [{transform_indices = @transform_0, window_bounds = array<i64: 8, 16>}, {pipeline_mode = #tpu.pipeline_mode<synchronous>, transform_indices = @transform_1, window_bounds = array<i64: 16, 64>}, {pipeline_mode = #tpu.pipeline_mode<synchronous>, transform_indices = @transform_2, window_bounds = array<i64: 1, 64>}, {pipeline_mode = #tpu.pipeline_mode<synchronous>, transform_indices = @transform_3, window_bounds = array<i64: 64, 32>}, {pipeline_mode = #tpu.pipeline_mode<synchronous>, transform_indices = @transform_4, window_bounds = array<i64: 1, 32>}, {pipeline_mode = #tpu.pipeline_mode<synchronous>, transform_indices = @transform_5, window_bounds = array<i64: 32, 8>}, {pipeline_mode = #tpu.pipeline_mode<synchronous>, transform_indices = @transform_6, window_bounds = array<i64: 1, 8>}, {transform_indices = @transform_7, window_bounds = array<i64: 8, 8>}]} {
    %c0 = arith.constant 0 : index
    %c0_0 = arith.constant 0 : index
    %0 = vector.load %arg1[%c0, %c0_0] : memref<8x16xbf16, #tpu.memory_space<vmem>>, vector<8x16xbf16>
    %c0_1 = arith.constant 0 : index
    %c0_2 = arith.constant 0 : index
    %1 = vector.load %arg2[%c0_1, %c0_2] : memref<16x64xbf16, #tpu.memory_space<vmem>>, vector<16x64xbf16>
    %cst = arith.constant dense<0.000000e+00> : vector<8x64xf32>
    %2 = tpu.matmul %0, %1, %cst {dimension_numbers = #tpu.dot_dimension_numbers<[1], [0], [0], [1], [0, 0, 1, 1], [], []>} : vector<8x16xbf16>, vector<16x64xbf16>, vector<8x64xf32> -> vector<8x64xf32>
    %c0_3 = arith.constant 0 : index
    %c0_4 = arith.constant 0 : index
    %3 = vector.load %arg3[%c0_3, %c0_4] : memref<1x64xf32, #tpu.memory_space<vmem>>, vector<1x64xf32>
    %4 = vector.broadcast %3 : vector<1x64xf32> to vector<8x64xf32>
    %5 = arith.addf %2, %4 : vector<8x64xf32>
    %cst_5 = arith.constant 0.000000e+00 : f32
    %6 = vector.broadcast %cst_5 : f32 to vector<8x64xf32>
    %7 = arith.maximumf %5, %6 : vector<8x64xf32>
    %8 = arith.truncf %7 : vector<8x64xf32> to vector<8x64xbf16>
    %c0_6 = arith.constant 0 : index
    %c0_7 = arith.constant 0 : index
    %9 = vector.load %arg4[%c0_6, %c0_7] : memref<64x32xbf16, #tpu.memory_space<vmem>>, vector<64x32xbf16>
    %cst_8 = arith.constant dense<0.000000e+00> : vector<8x32xf32>
    %10 = tpu.matmul %8, %9, %cst_8 {dimension_numbers = #tpu.dot_dimension_numbers<[1], [0], [0], [1], [0, 0, 1, 1], [], []>} : vector<8x64xbf16>, vector<64x32xbf16>, vector<8x32xf32> -> vector<8x32xf32>
    %c0_9 = arith.constant 0 : index
    %c0_10 = arith.constant 0 : index
    %11 = vector.load %arg5[%c0_9, %c0_10] : memref<1x32xf32, #tpu.memory_space<vmem>>, vector<1x32xf32>
    %12 = vector.broadcast %11 : vector<1x32xf32> to vector<8x32xf32>
    %13 = arith.addf %10, %12 : vector<8x32xf32>
    %cst_11 = arith.constant 0.000000e+00 : f32
    %14 = vector.broadcast %cst_11 : f32 to vector<8x32xf32>
    %15 = arith.maximumf %13, %14 : vector<8x32xf32>
    %16 = arith.truncf %15 : vector<8x32xf32> to vector<8x32xbf16>
    %c0_12 = arith.constant 0 : index
    %c0_13 = arith.constant 0 : index
    %17 = vector.load %arg6[%c0_12, %c0_13] : memref<32x8xbf16, #tpu.memory_space<vmem>>, vector<32x8xbf16>
    %cst_14 = arith.constant dense<0.000000e+00> : vector<8x8xf32>
    %18 = tpu.matmul %16, %17, %cst_14 {dimension_numbers = #tpu.dot_dimension_numbers<[1], [0], [0], [1], [0, 0, 1, 1], [], []>} : vector<8x32xbf16>, vector<32x8xbf16>, vector<8x8xf32> -> vector<8x8xf32>
    %c0_15 = arith.constant 0 : index
    %c0_16 = arith.constant 0 : index
    %19 = vector.load %arg7[%c0_15, %c0_16] : memref<1x8xf32, #tpu.memory_space<vmem>>, vector<1x8xf32>
    %20 = vector.broadcast %19 : vector<1x8xf32> to vector<8x8xf32>
    %21 = arith.addf %18, %20 : vector<8x8xf32>
    %c0_17 = arith.constant 0 : index
    %c0_18 = arith.constant 0 : index
    %22 = vector.load %arg8[%c0_17, %c0_18] : memref<8x8xf32, #tpu.memory_space<vmem>>, vector<8x8xf32>
    tpu.vector_store %arg8[%c0_17, %c0_18], %21 {strides = array<i32>} : memref<8x8xf32, #tpu.memory_space<vmem>>, vector<8x8xf32>,
    return
  }
  func.func @transform_0(%arg0: i32) -> (i32, i32) {
    %c0_i32 = arith.constant 0 : i32
    %c0_i32_0 = arith.constant 0 : i32
    return %arg0, %c0_i32 : i32, i32
  }
  func.func @transform_1(%arg0: i32) -> (i32, i32) {
    %c0_i32 = arith.constant 0 : i32
    %c0_i32_0 = arith.constant 0 : i32
    %c0_i32_1 = arith.constant 0 : i32
    return %c0_i32, %c0_i32_0 : i32, i32
  }
  func.func @transform_2(%arg0: i32) -> (i32, i32) {
    %c0_i32 = arith.constant 0 : i32
    %c0_i32_0 = arith.constant 0 : i32
    %c0_i32_1 = arith.constant 0 : i32
    return %c0_i32, %c0_i32_0 : i32, i32
  }
  func.func @transform_3(%arg0: i32) -> (i32, i32) {
    %c0_i32 = arith.constant 0 : i32
    %c0_i32_0 = arith.constant 0 : i32
    %c0_i32_1 = arith.constant 0 : i32
    return %c0_i32, %c0_i32_0 : i32, i32
  }
  func.func @transform_4(%arg0: i32) -> (i32, i32) {
    %c0_i32 = arith.constant 0 : i32
    %c0_i32_0 = arith.constant 0 : i32
    %c0_i32_1 = arith.constant 0 : i32
    return %c0_i32, %c0_i32_0 : i32, i32
  }
  func.func @transform_5(%arg0: i32) -> (i32, i32) {
    %c0_i32 = arith.constant 0 : i32
    %c0_i32_0 = arith.constant 0 : i32
    %c0_i32_1 = arith.constant 0 : i32
    return %c0_i32, %c0_i32_0 : i32, i32
  }
  func.func @transform_6(%arg0: i32) -> (i32, i32) {
    %c0_i32 = arith.constant 0 : i32
    %c0_i32_0 = arith.constant 0 : i32
    %c0_i32_1 = arith.constant 0 : i32
    return %c0_i32, %c0_i32_0 : i32, i32
  }
  func.func @transform_7(%arg0: i32) -> (i32, i32) {
    %c0_i32 = arith.constant 0 : i32
    %c0_i32_0 = arith.constant 0 : i32
    return %arg0, %c0_i32 : i32, i32
  }
}

</mosaic_0001>

<llo_original>
// kernel: tpu_custom_call.1
$region0: #{tpu_custom_call.1}
  #allocation0 [shape = 'u32[]', space=smem, size = 0x4, offset = 0x4, fixed_abs, tag = 'smem constant byte address 0x4 - core index']
  #allocation1 [shape = 'u32[144,128]{1,0:T(1,128)}', space=vmem, size = 0x12000, scoped, tag = 'internal scratch']
  %s0 = inlined_call_operand.hbm [shape: bf16[8,16], index: 0, kind: input, shape index: {}]
  %s1 = inlined_call_operand.hbm [shape: bf16[16,64], index: 1, kind: input, shape index: {}]
  %s2 = inlined_call_operand.hbm [shape: f32[1,64], index: 2, kind: input, shape index: {}]
  %s3 = inlined_call_operand.hbm [shape: bf16[64,32], index: 3, kind: input, shape index: {}]
  %s4 = inlined_call_operand.hbm [shape: f32[1,32], index: 4, kind: input, shape index: {}]
  %s5 = inlined_call_operand.hbm [shape: bf16[32,8], index: 5, kind: input, shape index: {}]
  %s6 = inlined_call_operand.hbm [shape: f32[1,8], index: 6, kind: input, shape index: {}]
  %s7 = inlined_call_operand.hbm [shape: f32[8,8], index: 7, kind: output, shape index: {}]
  %s8 = sld [smem:[#allocation0]]
  $region66: #{tpu_custom_call.1} parent=0
    _
  %s10 = ssub.s32 1, %s8
  %s11 = scalar_select 0, %s10, %s8
  $region1: #{tpu_custom_call.1} parent=0
    #allocation2 [shape = 'u8[2048]{0}', space=vmem, size = 0x800, scoped, tag = 'input window, operand 0, single buffered']
    #allocation3 [shape = 's32[1]{0}', space=sflag, size = 0x4, scoped, tag = 'scoped memory for tpu_custom_call.1']
    #allocation4 [shape = 's32[1]{0}', space=sflag, size = 0x4, scoped, tag = 'scoped memory for tpu_custom_call.1']
    #allocation5 [shape = 'u8[4096]{0}', space=vmem, size = 0x1000, scoped, tag = 'input window, operand 1, single buffered']
    #allocation6 [shape = 's32[1]{0}', space=sflag, size = 0x4, scoped, tag = 'scoped memory for tpu_custom_call.1']
    #allocation7 [shape = 'u8[512]{0}', space=vmem, size = 0x400, scoped, tag = 'input window, operand 2, single buffered']
    #allocation8 [shape = 'u8[16384]{0}', space=vmem, size = 0x4000, scoped, tag = 'input window, operand 3, single buffered']
    #allocation9 [shape = 's32[1]{0}', space=sflag, size = 0x4, scoped, tag = 'scoped memory for tpu_custom_call.1']
    #allocation10 [shape = 'u8[512]{0}', space=vmem, size = 0x400, scoped, tag = 'input window, operand 4, single buffered']
    #allocation11 [shape = 'u8[8192]{0}', space=vmem, size = 0x2000, scoped, tag = 'input window, operand 5, single buffered']
    #allocation12 [shape = 's32[1]{0}', space=sflag, size = 0x4, scoped, tag = 'scoped memory for tpu_custom_call.1']
    #allocation13 [shape = 'u8[512]{0}', space=vmem, size = 0x400, scoped, tag = 'input window, operand 6, single buffered']
    #allocation14 [shape = 'u8[4096]{0}', space=vmem, size = 0x1000, scoped, tag = 'output window, operand 0, single buffered']
    %12 = vsyncpa [#allocation3], 0
    %13 = vsyncpa [#allocation6], 0
    %14 = vsyncpa [#allocation9], 0
    %15 = vsyncpa [#allocation12], 0
    %16 = vsyncpa [#allocation4], 0
    // Predicated region
    $region2: #{tpu_custom_call.1} parent=1 // pred_check
      _
    $region3: #{tpu_custom_call.1} parent=1 // pred_check_branch
      %18 = sbr.rel (0) target = $region5
    $region4: #{tpu_custom_call.1} parent=1 // pred_region
      %s20 = ssub.s32 64, 64
      %21 = vsyncadd [#allocation3], %s20
      %s23 = sshll.u32 [#allocation2], 4
      %s24 = int_to_ptr.vmem [resolvable:$true] %s23
      %26 = dma.hbm_to_vmem [thread:$0]  %s0, 64, %s24, [#allocation3]
    $region5: #{tpu_custom_call.1} parent=1 // pred_fallthru
      _
    // Predicated region
    $region6: #{tpu_custom_call.1} parent=1 // pred_check
      _
    $region7: #{tpu_custom_call.1} parent=1 // pred_check_branch
      %28 = sbr.rel (0) target = $region9
    $region8: #{tpu_custom_call.1} parent=1 // pred_region
      %s30 = ssub.s32 128, 128
      %31 = vsyncadd [#allocation6], %s30
      %s32 = sshll.u32 [#allocation5], 4
      %s33 = int_to_ptr.vmem [resolvable:$true] %s32
      %38 = dma.hbm_to_vmem [thread:$0]  %s1, 128, %s33, [#allocation6], 64, 64, 4
    $region9: #{tpu_custom_call.1} parent=1 // pred_fallthru
      _
    // Predicated region
    $region10: #{tpu_custom_call.1} parent=1 // pred_check
      _
    $region11: #{tpu_custom_call.1} parent=1 // pred_check_branch
      %40 = sbr.rel (0) target = $region13
    $region12: #{tpu_custom_call.1} parent=1 // pred_region
      %s42 = ssub.s32 16, 16
      %43 = vsyncadd [#allocation6], %s42
      %s45 = sshll.u32 [#allocation7], 4
      %s46 = int_to_ptr.vmem [resolvable:$true] %s45
      %48 = dma.hbm_to_vmem [thread:$0]  %s2, 16, %s46, [#allocation6]
    $region13: #{tpu_custom_call.1} parent=1 // pred_fallthru
      _
    // Predicated region
    $region14: #{tpu_custom_call.1} parent=1 // pred_check
      _
    $region15: #{tpu_custom_call.1} parent=1 // pred_check_branch
      %50 = sbr.rel (0) target = $region17
    $region16: #{tpu_custom_call.1} parent=1 // pred_region
      %s52 = ssub.s32 512, 512
      %53 = vsyncadd [#allocation9], %s52
      %s54 = sshll.u32 [#allocation8], 4
      %s55 = int_to_ptr.vmem [resolvable:$true] %s54
      %60 = dma.hbm_to_vmem [thread:$0]  %s3, 512, %s55, [#allocation9], 64, 64, 4
    $region17: #{tpu_custom_call.1} parent=1 // pred_fallthru
      _
    // Predicated region
    $region18: #{tpu_custom_call.1} parent=1 // pred_check
      _
    $region19: #{tpu_custom_call.1} parent=1 // pred_check_branch
      %62 = sbr.rel (0) target = $region21
    $region20: #{tpu_custom_call.1} parent=1 // pred_region
      %s64 = ssub.s32 16, 16
      %65 = vsyncadd [#allocation9], %s64
      %s67 = sshll.u32 [#allocation10], 4
      %s68 = int_to_ptr.vmem [resolvable:$true] %s67
      %70 = dma.hbm_to_vmem [thread:$0]  %s4, 16, %s68, [#allocation9]
    $region21: #{tpu_custom_call.1} parent=1 // pred_fallthru
      _
    // Predicated region
    $region22: #{tpu_custom_call.1} parent=1 // pred_check
      _
    $region23: #{tpu_custom_call.1} parent=1 // pred_check_branch
      %72 = sbr.rel (0) target = $region25
    $region24: #{tpu_custom_call.1} parent=1 // pred_region
      %s74 = ssub.s32 256, 256
      %75 = vsyncadd [#allocation12], %s74
      %s76 = sshll.u32 [#allocation11], 4
      %s77 = int_to_ptr.vmem [resolvable:$true] %s76
      %82 = dma.hbm_to_vmem [thread:$0]  %s5, 256, %s77, [#allocation12], 64, 64, 4
    $region25: #{tpu_custom_call.1} parent=1 // pred_fallthru
      _
    // Predicated region
    $region26: #{tpu_custom_call.1} parent=1 // pred_check
      _
    $region27: #{tpu_custom_call.1} parent=1 // pred_check_branch
      %84 = sbr.rel (0) target = $region29
    $region28: #{tpu_custom_call.1} parent=1 // pred_region
      %s86 = ssub.s32 16, 16
      %87 = vsyncadd [#allocation12], %s86
      %s89 = sshll.u32 [#allocation13], 4
      %s90 = int_to_ptr.vmem [resolvable:$true] %s89
      %92 = dma.hbm_to_vmem [thread:$0]  %s6, 16, %s90, [#allocation12]
    $region29: #{tpu_custom_call.1} parent=1 // pred_fallthru
      _
    // Predicated region
    $region30: #{tpu_custom_call.1} parent=1 // pred_check
      _
    $region31: #{tpu_custom_call.1} parent=1 // pred_check_branch
      %94 = sbr.rel (0) target = $region33
    $region32: #{tpu_custom_call.1} parent=1 // pred_region
      %95 = dma.done [#allocation3], 64
    $region33: #{tpu_custom_call.1} parent=1 // pred_fallthru
      _
    // Predicated region
    $region34: #{tpu_custom_call.1} parent=1 // pred_check
      _
    $region35: #{tpu_custom_call.1} parent=1 // pred_check_branch
      %97 = sbr.rel (0) target = $region37
    $region36: #{tpu_custom_call.1} parent=1 // pred_region
      %98 = dma.done [#allocation6], 128
    $region37: #{tpu_custom_call.1} parent=1 // pred_fallthru
      _
    // Predicated region
    $region38: #{tpu_custom_call.1} parent=1 // pred_check
      _
    $region39: #{tpu_custom_call.1} parent=1 // pred_check_branch
      %100 = sbr.rel (0) target = $region41
    $region40: #{tpu_custom_call.1} parent=1 // pred_region
      %101 = dma.done [#allocation6], 16
    $region41: #{tpu_custom_call.1} parent=1 // pred_fallthru
      _
    // Predicated region
    $region42: #{tpu_custom_call.1} parent=1 // pred_check
      _
    $region43: #{tpu_custom_call.1} parent=1 // pred_check_branch
      %103 = sbr.rel (0) target = $region45
    $region44: #{tpu_custom_call.1} parent=1 // pred_region
      %104 = dma.done [#allocation9], 512
    $region45: #{tpu_custom_call.1} parent=1 // pred_fallthru
      _
    // Predicated region
    $region46: #{tpu_custom_call.1} parent=1 // pred_check
      _
    $region47: #{tpu_custom_call.1} parent=1 // pred_check_branch
      %106 = sbr.rel (0) target = $region49
    $region48: #{tpu_custom_call.1} parent=1 // pred_region
      %107 = dma.done [#allocation9], 16
    $region49: #{tpu_custom_call.1} parent=1 // pred_fallthru
      _
    // Predicated region
    $region50: #{tpu_custom_call.1} parent=1 // pred_check
      _
    $region51: #{tpu_custom_call.1} parent=1 // pred_check_branch
      %109 = sbr.rel (0) target = $region53
    $region52: #{tpu_custom_call.1} parent=1 // pred_region
      %110 = dma.done [#allocation12], 256
    $region53: #{tpu_custom_call.1} parent=1 // pred_fallthru
      _
    // Predicated region
    $region54: #{tpu_custom_call.1} parent=1 // pred_check
      _
    $region55: #{tpu_custom_call.1} parent=1 // pred_check_branch
      %112 = sbr.rel (0) target = $region57
    $region56: #{tpu_custom_call.1} parent=1 // pred_region
      %113 = dma.done [#allocation12], 16
    $region57: #{tpu_custom_call.1} parent=1 // pred_fallthru
      _
    %v115 = vld [vmem:[#allocation2] sm:$0xf]
    %v116 = vld [vmem:[#allocation5] sm:$0xf]
    %v117 = vld [vmem:[#allocation5 + $0x4] sm:$0xf]
    %v118 = vld [vmem:[#allocation7] sm:$0x1]
    %v120 = vlaneseq
    %v121 = vshrl.u32 %v120, 7
    %v122 = vsub.s32 0, %v121
    %v123 = vrot.slane %v118, %v122
    %v127 = vunpack.c.l.b16 %v116
    %v128 = vunpack.c.l.b16 %v117
    %v129 = vpack.c.b16 %v128, %v127
    %vm131 = vcmask 130048
    %v133 = vsel %vm131, %v115, 0
    %135 = vmatprep.subr.bf16.mxu0 0
    %136 = vmatpush1.bf16.msra.mxu0 %v129
    %137 = vmatprep.subr.bf16.mxu0 0
    %138 = vmatpush1.bf16.msra.mxu0 0
    %139 = vmatprep.subr.bf16.mxu0 0
    %140 = vmatpush1.bf16.msra.mxu0 0
    %141 = vmatprep.subr.bf16.mxu0 0
    %142 = vmatpush1.bf16.msra.mxu0 0
    %143 = vmatprep.subr.bf16.mxu0 0
    %144 = vmatpush1.bf16.msra.mxu0 0
    %145 = vmatprep.subr.bf16.mxu0 0
    %146 = vmatpush1.bf16.msra.mxu0 0
    %147 = vmatprep.subr.bf16.mxu0 0
    %148 = vmatpush1.bf16.msra.mxu0 0
    %149 = vmatprep.subr.bf16.mxu0 0
    %150 = vmatpush1.bf16.msra.mxu0 0
    %151 = vmatprep.subr.bf16.mxu0 0
    %152 = vmatpush1.bf16.msra.mxu0 0
    %153 = vmatprep.subr.bf16.mxu0 0
    %154 = vmatpush1.bf16.msra.mxu0 0
    %155 = vmatprep.subr.bf16.mxu0 0
    %156 = vmatpush1.bf16.msra.mxu0 0
    %157 = vmatprep.subr.bf16.mxu0 0
    %158 = vmatpush1.bf16.msra.mxu0 0
    %159 = vmatprep.subr.bf16.mxu0 0
    %160 = vmatpush1.bf16.msra.mxu0 0
    %161 = vmatprep.subr.bf16.mxu0 0
    %162 = vmatpush1.bf16.msra.mxu0 0
    %163 = vmatprep.subr.bf16.mxu0 0
    %164 = vmatpush1.bf16.msra.mxu0 0
    %165 = vmatprep.subr.bf16.mxu0 0
    %166 = vmatpush1.bf16.msra.mxu0 0
    %167 = vmatprep.mubr.bf16.mxu0 0
    %168 = vmatmul.mubr.bf16.gmra.mrb[0].mxu0 %v133
    %v169 = vpop.f32.mrb[0].mxu0
    %v170 = vadd.f32 %v123, %v169
    %v171 = vpop.f32.mrb[0].mxu0
    %v172 = vpop.f32.mrb[0].mxu0
    %v173 = vpop.f32.mrb[0].mxu0
    %174 = vdwg.mxu0
    %v175 = vmax.f32 %v170, 0.0
    %v176 = vpack.c.bf16 %v175, %v175
    %v177 = vld [vmem:[#allocation8] sm:$0xf]
    %v178 = vld [vmem:[#allocation8 + $0x4] sm:$0xf]
    %v179 = vld [vmem:[#allocation8 + $0x8] sm:$0xf]
    %v180 = vld [vmem:[#allocation8 + $0xc] sm:$0xf]
    %v181 = vld [vmem:[#allocation8 + $0x10] sm:$0xf]
    %v182 = vld [vmem:[#allocation8 + $0x14] sm:$0xf]
    %v183 = vld [vmem:[#allocation8 + $0x18] sm:$0xf]
    %v184 = vld [vmem:[#allocation8 + $0x1c] sm:$0xf]
    %v185 = vld [vmem:[#allocation10] sm:$0x1]
    %v187 = vlaneseq
    %v188 = vshrl.u32 %v187, 7
    %v189 = vsub.s32 0, %v188
    %v190 = vrot.slane %v185, %v189
    %v200 = vunpack.c.l.b16 %v177
    %v201 = vunpack.c.l.b16 %v178
    %v202 = vunpack.c.l.b16 %v179
    %v203 = vunpack.c.l.b16 %v180
    %v204 = vunpack.c.l.b16 %v181
    %v205 = vunpack.c.l.b16 %v182
    %v206 = vunpack.c.l.b16 %v183
    %v207 = vunpack.c.l.b16 %v184
    %v208 = vpack.c.b16 %v201, %v200
    %v209 = vpack.c.b16 %v203, %v202
    %v210 = vpack.c.b16 %v205, %v204
    %v211 = vpack.c.b16 %v207, %v206
    %vm216 = vcmask 523264
    %v218 = vsel %vm216, %v176, 0
    %220 = vmatprep.subr.bf16.mxu0 0
    %221 = vmatpush1.bf16.msra.mxu0 %v208
    %222 = vmatprep.subr.bf16.mxu0 0
    %223 = vmatpush1.bf16.msra.mxu0 %v209
    %224 = vmatprep.subr.bf16.mxu0 0
    %225 = vmatpush1.bf16.msra.mxu0 %v210
    %226 = vmatprep.subr.bf16.mxu0 0
    %227 = vmatpush1.bf16.msra.mxu0 %v211
    %228 = vmatprep.subr.bf16.mxu0 0
    %229 = vmatpush1.bf16.msra.mxu0 0
    %230 = vmatprep.subr.bf16.mxu0 0
    %231 = vmatpush1.bf16.msra.mxu0 0
    %232 = vmatprep.subr.bf16.mxu0 0
    %233 = vmatpush1.bf16.msra.mxu0 0
    %234 = vmatprep.subr.bf16.mxu0 0
    %235 = vmatpush1.bf16.msra.mxu0 0
    %236 = vmatprep.subr.bf16.mxu0 0
    %237 = vmatpush1.bf16.msra.mxu0 0
    %238 = vmatprep.subr.bf16.mxu0 0
    %239 = vmatpush1.bf16.msra.mxu0 0
    %240 = vmatprep.subr.bf16.mxu0 0
    %241 = vmatpush1.bf16.msra.mxu0 0
    %242 = vmatprep.subr.bf16.mxu0 0
    %243 = vmatpush1.bf16.msra.mxu0 0
    %244 = vmatprep.subr.bf16.mxu0 0
    %245 = vmatpush1.bf16.msra.mxu0 0
    %246 = vmatprep.subr.bf16.mxu0 0
    %247 = vmatpush1.bf16.msra.mxu0 0
    %248 = vmatprep.subr.bf16.mxu0 0
    %249 = vmatpush1.bf16.msra.mxu0 0
    %250 = vmatprep.subr.bf16.mxu0 0
    %251 = vmatpush1.bf16.msra.mxu0 0
    %252 = vmatprep.mubr.bf16.mxu0 0
    %253 = vmatmul.mubr.bf16.gmra.mrb[0].mxu0 %v218
    %v254 = vpop.f32.mrb[0].mxu0
    %v255 = vadd.f32 %v190, %v254
    %v256 = vpop.f32.mrb[0].mxu0
    %v257 = vpop.f32.mrb[0].mxu0
    %v258 = vpop.f32.mrb[0].mxu0
    %259 = vdwg.mxu0
    %v260 = vmax.f32 %v255, 0.0
    %v261 = vpack.c.bf16 %v260, %v260
    %v262 = vld [vmem:[#allocation11] sm:$0xf]
    %v263 = vld [vmem:[#allocation11 + $0x4] sm:$0xf]
    %v264 = vld [vmem:[#allocation11 + $0x8] sm:$0xf]
    %v265 = vld [vmem:[#allocation11 + $0xc] sm:$0xf]
    %v266 = vld [vmem:[#allocation13] sm:$0x1]
    %v268 = vlaneseq
    %v269 = vshrl.u32 %v268, 7
    %v270 = vsub.s32 0, %v269
    %v271 = vrot.slane %v266, %v270
    %v277 = vunpack.c.l.b16 %v262
    %v278 = vunpack.c.l.b16 %v263
    %v279 = vunpack.c.l.b16 %v264
    %v280 = vunpack.c.l.b16 %v265
    %v281 = vpack.c.b16 %v278, %v277
    %v282 = vpack.c.b16 %v280, %v279
    %vm285 = vcmask 261120
    %v287 = vsel %vm285, %v261, 0
    %289 = vmatprep.subr.bf16.mxu0 0
    %290 = vmatpush1.bf16.msra.mxu0 %v281
    %291 = vmatprep.subr.bf16.mxu0 0
    %292 = vmatpush1.bf16.msra.mxu0 %v282
    %293 = vmatprep.subr.bf16.mxu0 0
    %294 = vmatpush1.bf16.msra.mxu0 0
    %295 = vmatprep.subr.bf16.mxu0 0
    %296 = vmatpush1.bf16.msra.mxu0 0
    %297 = vmatprep.subr.bf16.mxu0 0
    %298 = vmatpush1.bf16.msra.mxu0 0
    %299 = vmatprep.subr.bf16.mxu0 0
    %300 = vmatpush1.bf16.msra.mxu0 0
    %301 = vmatprep.subr.bf16.mxu0 0
    %302 = vmatpush1.bf16.msra.mxu0 0
    %303 = vmatprep.subr.bf16.mxu0 0
    %304 = vmatpush1.bf16.msra.mxu0 0
    %305 = vmatprep.subr.bf16.mxu0 0
    %306 = vmatpush1.bf16.msra.mxu0 0
    %307 = vmatprep.subr.bf16.mxu0 0
    %308 = vmatpush1.bf16.msra.mxu0 0
    %309 = vmatprep.subr.bf16.mxu0 0
    %310 = vmatpush1.bf16.msra.mxu0 0
    %311 = vmatprep.subr.bf16.mxu0 0
    %312 = vmatpush1.bf16.msra.mxu0 0
    %313 = vmatprep.subr.bf16.mxu0 0
    %314 = vmatpush1.bf16.msra.mxu0 0
    %315 = vmatprep.subr.bf16.mxu0 0
    %316 = vmatpush1.bf16.msra.mxu0 0
    %317 = vmatprep.subr.bf16.mxu0 0
    %318 = vmatpush1.bf16.msra.mxu0 0
    %319 = vmatprep.subr.bf16.mxu0 0
    %320 = vmatpush1.bf16.msra.mxu0 0
    %321 = vmatprep.mubr.bf16.mxu0 0
    %322 = vmatmul.mubr.bf16.gmra.mrb[0].mxu0 %v287
    %v323 = vpop.f32.mrb[0].mxu0
    %v324 = vadd.f32 %v271, %v323
    %v325 = vpop.f32.mrb[0].mxu0
    %v326 = vpop.f32.mrb[0].mxu0
    %v327 = vpop.f32.mrb[0].mxu0
    %328 = vdwg.mxu0
    %vm329 = vcmask 64512
    %330 = vst.msk [vmem:[#allocation14] sm:$0xff] %vm329, %v324
    // Predicated region
    $region58: #{tpu_custom_call.1} parent=1 // pred_check
      _
    $region59: #{tpu_custom_call.1} parent=1 // pred_check_branch
      %332 = sbr.rel (0) target = $region61
    $region60: #{tpu_custom_call.1} parent=1 // pred_region
      %s334 = ssub.s32 128, 128
      %335 = vsyncadd [#allocation4], %s334
      %s337 = sshll.u32 [#allocation14], 4
      %s338 = int_to_ptr.vmem [resolvable:$true] %s337
      %340 = dma.vmem_to_hbm [thread:$0]  %s338, 128, %s7, [#allocation4]
    $region61: #{tpu_custom_call.1} parent=1 // pred_fallthru
      _
    // Predicated region
    $region62: #{tpu_custom_call.1} parent=1 // pred_check
      _
    $region63: #{tpu_custom_call.1} parent=1 // pred_check_branch
      %342 = sbr.rel (0) target = $region65
    $region64: #{tpu_custom_call.1} parent=1 // pred_region
      %343 = dma.done [#allocation4], 128
    $region65: #{tpu_custom_call.1} parent=1 // pred_fallthru
      _
    %344 = vsyncpa [#allocation3], 1
    %345 = vsyncpa [#allocation6], 1
    %346 = vsyncpa [#allocation9], 1
    %347 = vsyncpa [#allocation12], 1
    %348 = vsyncpa [#allocation4], 1

</llo_original>
